<compile_context>
chip_gen: v7x
topology: tpu7x:2x2x1
jax: 0.10.0
libtpu: 0.0.40
codegen_flags: <defaults>
</compile_context>

<pallas_src>
import functools
import math

import jax
import jax.numpy as jnp
from jax.experimental import pallas as pl
from jax.experimental.pallas import tpu as pltpu


_LANE = 128
_SUBLANE = 8
# Target per-block footprint for the x tile. The auto-pipeline double-buffers
# it, so steady-state VMEM use is ~2x this plus the (small) output/scratch.
_X_BLOCK_BYTES = 8 * 1024 * 1024
_VMEM_LIMIT_BYTES = 32 * 1024 * 1024


def _round_up(a, b):
    return (a + b - 1) // b * b


def _round_down(a, b):
    return a // b * b


def _mapreduce_kernel(w_ref, b_ref, x_ref, o_ref, acc_ref, *, c_total, tc, mask_c):
    # w_ref: (TC, 1) VMEM     b_ref: (1,) SMEM (f32 scalar)
    # x_ref: (TN, TC, THW)    o_ref: (TN, THW)    acc_ref: (TN, THW) f32 scratch
    k = pl.program_id(2)

    @pl.when(k == 0)
    def _():
        acc_ref[...] = jnp.zeros_like(acc_ref)

    x = x_ref[...]          # stays in input dtype (bf16 multiplies on the VPU)
    w = w_ref[...]          # pre-cast to x dtype by the wrapper
    prod = x * w            # (TN, TC, THW); w broadcasts over TN / THW
    if mask_c:
        # Partial tail block along C: garbage reads past C must never reach the
        # reduction (only the C axis is reduced, so this is the only mask needed).
        c_idx = k * tc + jax.lax.broadcasted_iota(jnp.int32, prod.shape, 1)
        prod = jnp.where(c_idx < c_total, prod, jnp.zeros_like(prod))
    acc_ref[...] += jnp.sum(prod, axis=1, dtype=jnp.float32)

    @pl.when(k == pl.num_programs(2) - 1)
    def _():
        o_ref[...] = (acc_ref[...] + b_ref[0]).astype(o_ref.dtype)


def map_reduce(x, weight, bias):
    """MapReduce forward (1x1 conv C->1). x: (N,C,H,W); weight: (1,C,1,1); bias: (1,)."""
    N, C, H, W = x.shape
    HW = H * W
    itemsize = jnp.dtype(x.dtype).itemsize

    # ---- tiling ------------------------------------------------------------
    # Batch tile: either full N (<8) or exactly 8 -> output block second-minor
    # dim is always legal (== N or a multiple of 8) and stores stay sublane-dense.
    TN = min(N, 8)

    # Minimum lane tile: keep each row's contiguous DMA run >= 2 KiB
    # (512 f32 / 1024 bf16 elements), but never request a block wider than HW
    # allows (only a full-extent block may be narrower than 128 lanes).
    thw_min = max(_LANE, _round_up(2048 // itemsize, _LANE))
    thw_cap = HW if HW < _LANE else _round_down(HW, _LANE)
    thw_min = min(thw_min, thw_cap)

    # Channel tile: take all of C if it fits the budget at the minimum lane
    # tile; otherwise tile C (multiple of 8) over a third "arbitrary" grid axis
    # and accumulate into the f32 scratch. This bounds the block footprint for
    # any (N, C) so we never exceed the scoped VMEM limit (or v7x's 64 MiB).
    if TN * C * thw_min * itemsize <= _X_BLOCK_BYTES:
        TC = C
    else:
        TC = max(_SUBLANE,
                 _round_down(_X_BLOCK_BYTES // (TN * thw_min * itemsize), _SUBLANE))

    # Lane tile: as large as the budget allows, multiple of 128, >= thw_min.
    budget_thw = _round_down(_X_BLOCK_BYTES // (TN * TC * itemsize), _LANE)
    THW = min(thw_cap, max(thw_min, budget_thw))

    grid = (pl.cdiv(N, TN), pl.cdiv(HW, THW), pl.cdiv(C, TC))
    mask_c = (C % TC) != 0

    # ---- operands (no padded copies of x) -----------------------------------
    x_flat = x.reshape(N, C, HW)
    w_col = weight.reshape(C, 1).astype(x.dtype)    # multiply in input dtype
    b_vec = bias.reshape(1).astype(jnp.float32)     # scalar, lives in SMEM

    kernel = functools.partial(_mapreduce_kernel, c_total=C, tc=TC, mask_c=mask_c)

    cost = pl.CostEstimate(
        flops=2 * N * C * HW,
        transcendentals=0,
        bytes_accessed=itemsize * (N * C * HW + N * HW + C) + 4,
    )

    out_flat = pl.pallas_call(
        kernel,
        out_shape=jax.ShapeDtypeStruct((N, HW), x.dtype),
        grid_spec=pltpu.PrefetchScalarGridSpec(
            num_scalar_prefetch=0,
            grid=grid,
            in_specs=[
                pl.BlockSpec((TC, 1), lambda i, j, k: (k, 0)),              # weight
                pl.BlockSpec(memory_space=pltpu.MemorySpace.SMEM),          # bias
                pl.BlockSpec((TN, TC, THW), lambda i, j, k: (i, k, j)),     # x tile
            ],
            out_specs=pl.BlockSpec((TN, THW), lambda i, j, k: (i, j)),
            scratch_shapes=[pltpu.VMEM((TN, THW), jnp.float32)],
        ),
        compiler_params=pltpu.CompilerParams(
            dimension_semantics=("parallel", "parallel", "arbitrary"),
            vmem_limit_bytes=_VMEM_LIMIT_BYTES,
        ),
        cost_estimate=cost,
    )(w_col, b_vec, x_flat)

    return out_flat.reshape(N, 1, H, W)


if __name__ == "__main__":
    key = jax.random.PRNGKey(0)
    k_x, k_w = jax.random.split(key)

    N, C, H, W = 2, 4, 16, 16
    x = jax.random.normal(k_x, (N, C, H, W), dtype=jnp.float32)

    # Deterministic params: mimic nn.Conv2d default kaiming-uniform bound,
    # bias constant 0 (as in the module's __init__).
    fan_in = C * 1 * 1
    bound = 1.0 / math.sqrt(fan_in)
    weight = jax.random.uniform(
        k_w, (1, C, 1, 1), minval=-bound, maxval=bound, dtype=jnp.float32
    )
    bias = jnp.zeros((1,), dtype=jnp.float32)

    out = map_reduce(x, weight, bias)
    out = jax.block_until_ready(out)

    # Reference check (plain JAX 1x1 conv semantics).
    ref = jnp.einsum("nchw,oc->nohw", x, weight.reshape(1, C)) + bias.reshape(1, 1, 1, 1)
    assert out.shape == (N, 1, H, W)
    assert jnp.allclose(out, ref, atol=1e-5, rtol=1e-5)

    print("KERNEL_OK")
</pallas_src>

<mosaic_0001>
module attributes {stable_mosaic.version = 11 : i64} {
  func.func @_mapreduce_kernel(%arg0: i32, %arg1: i32, %arg2: i32, %arg3: memref<4x1xf32, #tpu.memory_space<vmem>>, %arg4: memref<1xf32, #tpu.memory_space<smem>>, %arg5: memref<2x4x256xf32, #tpu.memory_space<vmem>>, %arg6: memref<2x256xf32, #tpu.memory_space<vmem>>, %arg7: memref<2x256xf32, #tpu.memory_space<vmem>>) attributes {dimension_semantics = [#tpu.dimension_semantics<parallel>, #tpu.dimension_semantics<parallel>, #tpu.dimension_semantics<arbitrary>], iteration_bounds = array<i64: 1, 1, 1>, scalar_prefetch = 0 : i64, scratch_operands = 1 : i64, tpu.core_type = #tpu.core_type<tc>, window_params = [{transform_indices = @transform_0, window_bounds = array<i64: 4, 1>}, {transform_indices = @transform_1, window_bounds = array<i64: 1>}, {transform_indices = @transform_2, window_bounds = array<i64: 2, 4, 256>}, {transform_indices = @transform_3, window_bounds = array<i64: 2, 256>}]} {
    %c0_i32 = arith.constant 0 : i32
    %0 = arith.cmpi eq, %arg2, %c0_i32 : i32
    %1 = arith.extui %0 : i1 to i32
    %c0_i32_0 = arith.constant 0 : i32
    %2 = arith.cmpi ne, %1, %c0_i32_0 : i32
    scf.if %2 {
      %cst_11 = arith.constant 0.000000e+00 : f32
      %15 = vector.broadcast %cst_11 : f32 to vector<2x256xf32>
      %c0_12 = arith.constant 0 : index
      %c0_13 = arith.constant 0 : index
      %16 = vector.load %arg7[%c0_12, %c0_13] : memref<2x256xf32, #tpu.memory_space<vmem>>, vector<2x256xf32>
      tpu.vector_store %arg7[%c0_12, %c0_13], %15 {strides = array<i32>} : memref<2x256xf32, #tpu.memory_space<vmem>>, vector<2x256xf32>,
    } else {
    }
    %c0 = arith.constant 0 : index
    %c0_1 = arith.constant 0 : index
    %c0_2 = arith.constant 0 : index
    %3 = vector.load %arg5[%c0, %c0_1, %c0_2] : memref<2x4x256xf32, #tpu.memory_space<vmem>>, vector<2x4x256xf32>
    %c0_3 = arith.constant 0 : index
    %c0_4 = arith.constant 0 : index
    %4 = vector.load %arg3[%c0_3, %c0_4] : memref<4x1xf32, #tpu.memory_space<vmem>>, vector<4x1xf32>
    %5 = vector.shape_cast %4 : vector<4x1xf32> to vector<1x4x1xf32>
    %6 = vector.broadcast %5 : vector<1x4x1xf32> to vector<2x4x256xf32>
    %7 = arith.mulf %3, %6 : vector<2x4x256xf32>
    %c0_5 = arith.constant 0 : index
    %c0_6 = arith.constant 0 : index
    %8 = vector.load %arg7[%c0_5, %c0_6] : memref<2x256xf32, #tpu.memory_space<vmem>>, vector<2x256xf32>
    %cst = arith.constant dense<0.000000e+00> : vector<2x256xf32>
    %9 = vector.multi_reduction <add>, %7, %cst [1] : vector<2x4x256xf32> to vector<2x256xf32>
    %10 = arith.addf %8, %9 : vector<2x256xf32>
    %c0_7 = arith.constant 0 : index
    %c0_8 = arith.constant 0 : index
    %11 = vector.load %arg7[%c0_7, %c0_8] : memref<2x256xf32, #tpu.memory_space<vmem>>, vector<2x256xf32>
    tpu.vector_store %arg7[%c0_7, %c0_8], %10 {strides = array<i32>} : memref<2x256xf32, #tpu.memory_space<vmem>>, vector<2x256xf32>,
    %c0_i32_9 = arith.constant 0 : i32
    %12 = arith.cmpi eq, %arg2, %c0_i32_9 : i32
    %13 = arith.extui %12 : i1 to i32
    %c0_i32_10 = arith.constant 0 : i32
    %14 = arith.cmpi ne, %13, %c0_i32_10 : i32
    scf.if %14 {
      %c0_11 = arith.constant 0 : index
      %c0_12 = arith.constant 0 : index
      %15 = vector.load %arg7[%c0_11, %c0_12] : memref<2x256xf32, #tpu.memory_space<vmem>>, vector<2x256xf32>
      %c0_13 = arith.constant 0 : index
      %16 = memref.load %arg4[%c0_13] : memref<1xf32, #tpu.memory_space<smem>>
      %17 = vector.broadcast %16 : f32 to vector<2x256xf32>
      %18 = arith.addf %15, %17 : vector<2x256xf32>
      %c0_14 = arith.constant 0 : index
      %c0_15 = arith.constant 0 : index
      %19 = vector.load %arg6[%c0_14, %c0_15] : memref<2x256xf32, #tpu.memory_space<vmem>>, vector<2x256xf32>
      tpu.vector_store %arg6[%c0_14, %c0_15], %18 {strides = array<i32>} : memref<2x256xf32, #tpu.memory_space<vmem>>, vector<2x256xf32>,
    } else {
    }
    return
  }
  func.func @transform_0(%arg0: i32, %arg1: i32, %arg2: i32) -> (i32, i32) {
    %c0_i32 = arith.constant 0 : i32
    %c0_i32_0 = arith.constant 0 : i32
    return %arg2, %c0_i32 : i32, i32
  }
  func.func @transform_1(%arg0: i32, %arg1: i32, %arg2: i32) -> i32 {
    %c0_i32 = arith.constant 0 : i32
    %c0_i32_0 = arith.constant 0 : i32
    return %c0_i32 : i32
  }
  func.func @transform_2(%arg0: i32, %arg1: i32, %arg2: i32) -> (i32, i32, i32) {
    %c0_i32 = arith.constant 0 : i32
    return %arg0, %arg2, %arg1 : i32, i32, i32
  }
  func.func @transform_3(%arg0: i32, %arg1: i32, %arg2: i32) -> (i32, i32) {
    %c0_i32 = arith.constant 0 : i32
    return %arg0, %arg1 : i32, i32
  }
}

</mosaic_0001>

<llo_original>
// kernel: tpu_custom_call.1
$region0: #{tpu_custom_call.1}
  #allocation0 [shape = 'u32[]', space=smem, size = 0x4, offset = 0x4, fixed_abs, tag = 'smem constant byte address 0x4 - core index']
  #allocation1 [shape = 'u32[144,128]{1,0:T(1,128)}', space=vmem, size = 0x12000, scoped, tag = 'internal scratch']
  #allocation2 [shape = 'f32[2,256]{1,0:T(2,128)}', space=vmem, size = 0x800, scoped, tag = 'scratch operand']
  #allocation3 [shape = 'f32[1]{0:T(128)S(6)}', space=smem, size = 0x200, scoped, tag = 'scoped memory for tpu_custom_call.1']
  %s0 = inlined_call_operand.vmem [shape: f32[4,1], index: 0, kind: input, shape index: {}]
  %s1 = inlined_call_operand.<no memory space> [shape: f32[1], index: 1, kind: input, shape index: {}]
  %s2 = inlined_call_operand.hbm [shape: f32[2,4,256], index: 2, kind: input, shape index: {}]
  %s3 = inlined_call_operand.hbm [shape: f32[2,256], index: 3, kind: output, shape index: {}]
  %s4 = sld [smem:[#allocation0]]
  $region34: #{tpu_custom_call.1} parent=0
    _
  %s6 = ssub.s32 1, %s4
  %s7 = scalar_select 0, %s6, %s4
  %8 = sst [smem:[#allocation3]] %s1
  $region1: #{tpu_custom_call.1} parent=0
    #allocation4 [shape = 'u8[8192]{0}', space=vmem, size = 0x2000, scoped, tag = 'input window, operand 2, single buffered']
    #allocation5 [shape = 's32[1]{0}', space=sflag, size = 0x4, scoped, tag = 'scoped memory for tpu_custom_call.1']
    #allocation6 [shape = 's32[1]{0}', space=sflag, size = 0x4, scoped, tag = 'scoped memory for tpu_custom_call.1']
    #allocation7 [shape = 'u8[2048]{0}', space=vmem, size = 0x800, scoped, tag = 'output window, operand 0, single buffered']
    %9 = vsyncpa [#allocation5], 0
    %10 = vsyncpa [#allocation6], 0
    // Predicated region
    $region2: #{tpu_custom_call.1} parent=1 // pred_check
      _
    $region3: #{tpu_custom_call.1} parent=1 // pred_check_branch
      %12 = sbr.rel (0) target = $region5
    $region4: #{tpu_custom_call.1} parent=1 // pred_region
      _
    $region5: #{tpu_custom_call.1} parent=1 // pred_fallthru
      _
    // Predicated region
    $region6: #{tpu_custom_call.1} parent=1 // pred_check
      _
    $region7: #{tpu_custom_call.1} parent=1 // pred_check_branch
      %14 = sbr.rel (0) target = $region9
    $region8: #{tpu_custom_call.1} parent=1 // pred_region
      _
    $region9: #{tpu_custom_call.1} parent=1 // pred_fallthru
      _
    // Predicated region
    $region10: #{tpu_custom_call.1} parent=1 // pred_check
      _
    $region11: #{tpu_custom_call.1} parent=1 // pred_check_branch
      %16 = sbr.rel (0) target = $region13
    $region12: #{tpu_custom_call.1} parent=1 // pred_region
      %s18 = ssub.s32 256, 256
      %19 = vsyncadd [#allocation5], %s18
      %s20 = sshll.u32 [#allocation4], 4
      %s21 = int_to_ptr.vmem [resolvable:$true] %s20
      %26 = dma.hbm_to_vmem [thread:$0]  %s2, 256, %s21, [#allocation5], 128, 128, 8
    $region13: #{tpu_custom_call.1} parent=1 // pred_fallthru
      _
    // Predicated region
    $region14: #{tpu_custom_call.1} parent=1 // pred_check
      _
    $region15: #{tpu_custom_call.1} parent=1 // pred_check_branch
      %28 = sbr.rel (0) target = $region17
    $region16: #{tpu_custom_call.1} parent=1 // pred_region
      %29 = dma.done [#allocation5], 256
    $region17: #{tpu_custom_call.1} parent=1 // pred_fallthru
      _
    %p30 = scmp.eq.s32.totalorder 0, 0
    // Predicated region
    $region18: #{tpu_custom_call.1} parent=1 // pred_check
      %p31 = pneg %p30
    $region19: #{tpu_custom_call.1} parent=1 // pred_check_branch
      %33 = sbr.rel (%p31) target = $region21
    $region20: #{tpu_custom_call.1} parent=1 // pred_region
      %34 = vst [vmem:[#allocation2] sm:$0xf] 0.0
    $region21: #{tpu_custom_call.1} parent=1 // pred_fallthru
      _
    %v35 = vld [vmem:[#allocation4] sm:$0xff]
    %v36 = vld [vmem:[#allocation4 + $0x8] sm:$0xff]
    %v37 = vld [vmem:[%s0] sm:$0xf]
    %39 = vset.pattern.permute.xlu0 0
    %40 = vperm.xlu0 %39, %v37
    %v41 = vpop.permute.xlu0 %40
    %v43 = vunpack.c.l.s4 839922192
    %v44 = vunpack.c.0.s8 %v43
    %v45 = vlaneseq
    %v46 = vshrl.u32 %v45, 7
    %v47 = vsub.s32 %v44, %v46
    %v48 = vrot.slane %v41, %v47
    %v50 = vmul.f32 %v35, %v48
    %v51 = vmul.f32 %v36, %v48
    %v52 = vld [vmem:[#allocation2] sm:$0xf]
    %v55 = vcombine.high %v50, %v50
    %v56 = vcombine.high %v51, %v51
    %vm59 = vcmask 1043456
    %v60 = vsel %vm59, %v50, 0.0
    %v61 = vrot.slane %v60, 4
    %v62 = vadd.f32 %v60, %v61
    %v63 = vrot.slane %v62, 2
    %v64 = vadd.f32 %v62, %v63
    %v65 = vrot.slane %v64, 1
    %v66 = vadd.f32 %v64, %v65
    %v67 = vsel %vm59, %v55, 0.0
    %v68 = vrot.slane %v67, 4
    %v69 = vadd.f32 %v67, %v68
    %v70 = vrot.slane %v69, 2
    %v71 = vadd.f32 %v69, %v70
    %v72 = vrot.slane %v71, 1
    %v73 = vadd.f32 %v71, %v72
    %v74 = vsel %vm59, %v51, 0.0
    %v75 = vrot.slane %v74, 4
    %v76 = vadd.f32 %v74, %v75
    %v77 = vrot.slane %v76, 2
    %v78 = vadd.f32 %v76, %v77
    %v79 = vrot.slane %v78, 1
    %v80 = vadd.f32 %v78, %v79
    %v81 = vsel %vm59, %v56, 0.0
    %v82 = vrot.slane %v81, 4
    %v83 = vadd.f32 %v81, %v82
    %v84 = vrot.slane %v83, 2
    %v85 = vadd.f32 %v83, %v84
    %v86 = vrot.slane %v85, 1
    %v87 = vadd.f32 %v85, %v86
    %v92 = vcombine.low %v66, %v73
    %v94 = vunpack.c.l.s4 1983009808
    %v95 = vunpack.c.0.s8 %v94
    %v96 = vlaneseq
    %v97 = vshrl.u32 %v96, 7
    %v98 = vsub.s32 %v95, %v97
    %v99 = vrot.slane %v92, %v98
    %v100 = vcombine.low %v80, %v87
    %v102 = vunpack.c.l.s4 1983009808
    %v103 = vunpack.c.0.s8 %v102
    %v104 = vlaneseq
    %v105 = vshrl.u32 %v104, 7
    %v106 = vsub.s32 %v103, %v105
    %v107 = vrot.slane %v100, %v106
    %vm108 = vcmask 1044484
    %v109 = vsel %vm108, %v99, %v99
    %vm110 = vcmask 1046534
    %v111 = vsel %vm110, %v99, %v109
    %v112 = vrot.slane %v107, 7
    %vm113 = vcmask 1041409
    %v114 = vsel %vm113, %v112, %v111
    %vm115 = vcmask 1043459
    %v116 = vsel %vm115, %v112, %v114
    %vm117 = vcmask 1045509
    %v118 = vsel %vm117, %v112, %v116
    %vm119 = vcmask 1047559
    %v120 = vsel %vm119, %v112, %v118
    %v122 = vadd.f32 %v52, %v120
    %123 = vst [vmem:[#allocation2] sm:$0xf] %v122
    // Predicated region
    $region22: #{tpu_custom_call.1} parent=1 // pred_check
      %p124 = pneg %p30
    $region23: #{tpu_custom_call.1} parent=1 // pred_check_branch
      %126 = sbr.rel (%p124) target = $region25
    $region24: #{tpu_custom_call.1} parent=1 // pred_region
      %v127 = vld [vmem:[#allocation2] sm:$0xf]
      %s128 = sld [smem:[#allocation3]]
      %v129 = vstv %s128
      %v130 = vadd.f32 %v127, %v129
      %131 = vst [vmem:[#allocation7] sm:$0xf] %v130
    $region25: #{tpu_custom_call.1} parent=1 // pred_fallthru
      _
    // Predicated region
    $region26: #{tpu_custom_call.1} parent=1 // pred_check
      _
    $region27: #{tpu_custom_call.1} parent=1 // pred_check_branch
      %133 = sbr.rel (0) target = $region29
    $region28: #{tpu_custom_call.1} parent=1 // pred_region
      %s135 = ssub.s32 64, 64
      %136 = vsyncadd [#allocation6], %s135
      %s138 = sshll.u32 [#allocation7], 4
      %s139 = int_to_ptr.vmem [resolvable:$true] %s138
      %141 = dma.vmem_to_hbm [thread:$0]  %s139, 64, %s3, [#allocation6]
    $region29: #{tpu_custom_call.1} parent=1 // pred_fallthru
      _
    // Predicated region
    $region30: #{tpu_custom_call.1} parent=1 // pred_check
      _
    $region31: #{tpu_custom_call.1} parent=1 // pred_check_branch
      %143 = sbr.rel (0) target = $region33
    $region32: #{tpu_custom_call.1} parent=1 // pred_region
      %144 = dma.done [#allocation6], 64
    $region33: #{tpu_custom_call.1} parent=1 // pred_fallthru
      _
    %145 = vsyncpa [#allocation5], 1
    %146 = vsyncpa [#allocation6], 1

</llo_original>
